<compile_context>
chip_gen: v6e
topology: v6e:2x2x1
jax: 0.10.0
libtpu: 0.0.40
codegen_flags: <defaults>
</compile_context>

<pallas_src>
import functools

import jax
import jax.numpy as jnp
from jax.experimental import pallas as pl
from jax.experimental.pallas import tpu as pltpu

CONV_OUT = 64          # conv1 output channels (resnet path of get_base_bacbone)
FEAT_DIM = 1000        # per-branch backbone feature dim (torchvision head -> 1000)
K_TAPS = 49            # 7x7 conv taps
K_PAD = 56             # 49 -> 56, aligned contraction dim (do NOT pad to 128: HBM-bound regime)
LANE = 128
SUBLANE = 8


# ----------------------------- Pallas kernel ------------------------------ #

def _branch_acc_kernel(p_ref, wc_ref, wcomb_ref, b_ref, o_ref, *, inv_s):
    """One (batch-tile, branch) step: conv-as-matmul -> ReLU -> GAP -> folded (fc o classifier)
    matmul, accumulated into the VMEM-resident (bt, nc_pad) logits across the branch axis."""
    br = pl.program_id(1)                                            # branch (reduction) axis

    _, bt, s_pad, kp = p_ref.shape
    patches = p_ref[0].reshape(bt * s_pad, kp)                       # [bt*S_pad, 56]  bf16
    conv = jnp.dot(patches, wc_ref[0],
                   preferred_element_type=jnp.float32)               # [bt*S_pad, 64]  MXU, f32
    conv = jnp.maximum(conv, 0.0)                                    # ReLU (VPU, f32)
    pooled = jnp.sum(conv.reshape(bt, s_pad, CONV_OUT), axis=1) * inv_s   # GAP, true-S average
    contrib = jnp.dot(pooled.astype(wcomb_ref.dtype), wcomb_ref[0],
                      preferred_element_type=jnp.float32)            # [bt, nc_pad]  MXU, f32

    @pl.when(br == 0)
    def _():                                                         # init with combined bias
        o_ref[...] = jnp.zeros_like(o_ref) + b_ref[...]

    o_ref[...] += contrib                                            # accumulate over branches


# ----------------------------- glue (plain JAX) ---------------------------- #

def im2col_7x7_s2_p3(x):
    """x: [nb, B, H, W] -> patches [nb, B, Ho*Wo, 49] for a 7x7 stride-2 pad-3 conv."""
    nb, B, H, W = x.shape
    Ho, Wo = (H + 1) // 2, (W + 1) // 2
    xp = jnp.pad(x, ((0, 0), (0, 0), (3, 3), (3, 3)))
    cols = []
    for kh in range(7):
        for kw in range(7):
            cols.append(xp[:, :, kh:kh + 2 * Ho - 1:2, kw:kw + 2 * Wo - 1:2])
    p = jnp.stack(cols, axis=-1)                                     # [nb, B, Ho, Wo, 49]
    return p.reshape(nb, B, Ho * Wo, K_TAPS)


def _round_up(v, m):
    return ((v + m - 1) // m) * m


def _choose_bt(b_pad, s_pad, nc_pad, vmem_budget_bytes=32 * 1024 * 1024):
    """VMEM-derived batch tile (multiple of 8 dividing b_pad), accounting for S."""
    per_row = (2 * s_pad * K_PAD * 2          # double-buffered bf16 patch rows
               + s_pad * CONV_OUT * 4         # f32 conv intermediate
               + 2 * nc_pad * 4)              # resident f32 output rows (headroom x2)
    weight_bytes = 2 * (K_PAD * CONV_OUT * 2 + CONV_OUT * nc_pad * 2 + nc_pad * 4)
    usable = max(vmem_budget_bytes - weight_bytes, per_row * SUBLANE)
    bt = max(SUBLANE, (usable // per_row) // SUBLANE * SUBLANE)
    bt = min(bt, b_pad)
    while b_pad % bt != 0:                    # b_pad is a multiple of 8 -> terminates at 8
        bt -= SUBLANE
    # Prefer >=2 batch tiles so the "parallel" axis can feed both v7x TensorCores.
    if bt == b_pad and b_pad >= 2 * SUBLANE and (b_pad // 2) % SUBLANE == 0:
        bt = b_pad // 2
    return bt


def init_params(key, branch_num, num_classes, conv_out=CONV_OUT, feat_dim=FEAT_DIM):
    k = jax.random.split(key, 5)
    return dict(
        # conv1 per branch: OIHW [Cout, 1, 7, 7], bias=False (get_base_bacbone resnet path)
        w_conv=jax.random.normal(k[0], (branch_num, conv_out, 1, 7, 7), jnp.float32) * 0.05,
        # per-branch backbone head -> 1000 features (stored as [Cin, Cout] for x @ W)
        w_fc=jax.random.normal(k[1], (branch_num, conv_out, feat_dim), jnp.float32) * 0.05,
        b_fc=jax.random.normal(k[2], (branch_num, feat_dim), jnp.float32) * 0.01,
        # classifier: Linear(1000 * branch_num, num_classes) (mlp_num=None path)
        w_cls=jax.random.normal(k[3], (feat_dim * branch_num, num_classes), jnp.float32) * 0.02,
        b_cls=jax.random.normal(k[4], (num_classes,), jnp.float32) * 0.01,
    )


def multi_branch_cat_forward(x, params, num_classes):
    B, nb, H, W = x.shape
    Ho, Wo = (H + 1) // 2, (W + 1) // 2
    S = Ho * Wo
    S_pad = _round_up(S, SUBLANE)
    nc_pad = _round_up(num_classes, LANE)
    B_pad = _round_up(B, SUBLANE)

    # ---- backbone operands: bf16 BEFORE im2col so the materialized patches are bf16 ----
    xt = jnp.transpose(x, (1, 0, 2, 3)).astype(jnp.bfloat16)         # [nb, B, H, W]
    if B_pad != B:
        xt = jnp.pad(xt, ((0, 0), (0, B_pad - B), (0, 0), (0, 0)))
    patches = im2col_7x7_s2_p3(xt)                                    # [nb, B_pad, S, 49] bf16
    patches = jnp.pad(patches,
                      ((0, 0), (0, 0), (0, S_pad - S), (0, K_PAD - K_TAPS)))

    w_conv = params['w_conv'].reshape(nb, CONV_OUT, K_TAPS).transpose(0, 2, 1)   # [nb, 49, 64]
    w_conv = jnp.pad(w_conv, ((0, 0), (0, K_PAD - K_TAPS), (0, 0))).astype(jnp.bfloat16)

    # ---- fold fc (64->1000) and classifier (1000*nb->nc): both linear, nothing in between:
    #   logits = sum_b pooled_b @ (w_fc[b] @ w_cls[b]) + (sum_b b_fc[b] @ w_cls[b] + b_cls)
    w_cls = params['w_cls'].reshape(nb, FEAT_DIM, num_classes)
    w_comb = jnp.einsum('bif,bfc->bic', params['w_fc'], w_cls)        # [nb, 64, nc]  (f32 fold)
    w_comb = jnp.pad(w_comb, ((0, 0), (0, 0), (0, nc_pad - num_classes))).astype(jnp.bfloat16)
    b_comb = jnp.einsum('bf,bfc->c', params['b_fc'], w_cls) + params['b_cls']     # [nc]
    b_comb = jnp.pad(b_comb, (0, nc_pad - num_classes)).reshape(1, nc_pad).astype(jnp.float32)

    bt = _choose_bt(B_pad, S_pad, nc_pad)
    nbt = B_pad // bt
    inv_s = 1.0 / float(S)                    # true-S average despite zero-padded patch rows

    kernel = functools.partial(_branch_acc_kernel, inv_s=inv_s)

    out = pl.pallas_call(
        kernel,
        out_shape=jax.ShapeDtypeStruct((B_pad, nc_pad), jnp.float32),
        grid=(nbt, nb),                                   # branch (reduction) axis innermost
        in_specs=[
            pl.BlockSpec((1, bt, S_pad, K_PAD), lambda j, i: (i, j, 0, 0)),
            pl.BlockSpec((1, K_PAD, CONV_OUT), lambda j, i: (i, 0, 0)),
            pl.BlockSpec((1, CONV_OUT, nc_pad), lambda j, i: (i, 0, 0)),
            pl.BlockSpec((1, nc_pad), lambda j, i: (0, 0)),
        ],
        out_specs=pl.BlockSpec((bt, nc_pad), lambda j, i: (j, 0)),    # resident across branches
        compiler_params=pltpu.CompilerParams(
            dimension_semantics=("parallel", "arbitrary"),
            vmem_limit_bytes=48 * 1024 * 1024),
    )(patches, w_conv, w_comb, b_comb)

    return out[:B, :num_classes]


if __name__ == "__main__":
    B, branch_num, H, W = 2, 4, 16, 16
    num_classes = 10

    key = jax.random.PRNGKey(0)
    kx, kp = jax.random.split(key)
    x = jax.random.normal(kx, (B, branch_num, H, W), jnp.float32)
    params = init_params(kp, branch_num, num_classes)

    out = multi_branch_cat_forward(x, params, num_classes)
    out = jax.block_until_ready(out)

    assert out.shape == (B, num_classes)
    assert bool(jnp.all(jnp.isfinite(out)))
    print("KERNEL_OK")
</pallas_src>

<mosaic_0001>
module attributes {stable_mosaic.version = 11 : i64} {
  func.func @_branch_acc_kernel(%arg0: i32, %arg1: i32, %arg2: memref<1x8x64x56xbf16, #tpu.memory_space<vmem>>, %arg3: memref<1x56x64xbf16, #tpu.memory_space<vmem>>, %arg4: memref<1x64x128xbf16, #tpu.memory_space<vmem>>, %arg5: memref<1x128xf32, #tpu.memory_space<vmem>>, %arg6: memref<8x128xf32, #tpu.memory_space<vmem>>) attributes {dimension_semantics = [#tpu.dimension_semantics<parallel>, #tpu.dimension_semantics<arbitrary>], iteration_bounds = array<i64: 1, 4>, scalar_prefetch = 0 : i64, scratch_operands = 0 : i64, tpu.core_type = #tpu.core_type<tc>, window_params = [{transform_indices = @transform_0, window_bounds = array<i64: 1, 8, 64, 56>}, {transform_indices = @transform_1, window_bounds = array<i64: 1, 56, 64>}, {transform_indices = @transform_2, window_bounds = array<i64: 1, 64, 128>}, {pipeline_mode = #tpu.pipeline_mode<synchronous>, transform_indices = @transform_3, window_bounds = array<i64: 1, 128>}, {transform_indices = @transform_4, window_bounds = array<i64: 8, 128>}]} {
    %c0 = arith.constant 0 : index
    %c0_0 = arith.constant 0 : index
    %c0_1 = arith.constant 0 : index
    %c0_2 = arith.constant 0 : index
    %0 = vector.load %arg2[%c0, %c0_0, %c0_1, %c0_2] : memref<1x8x64x56xbf16, #tpu.memory_space<vmem>>, vector<1x8x64x56xbf16>
    %1 = vector.shape_cast %0 : vector<1x8x64x56xbf16> to vector<8x64x56xbf16>
    %2 = vector.shape_cast %1 : vector<8x64x56xbf16> to vector<512x56xbf16>
    %c0_3 = arith.constant 0 : index
    %c0_4 = arith.constant 0 : index
    %c0_5 = arith.constant 0 : index
    %3 = vector.load %arg3[%c0_3, %c0_4, %c0_5] : memref<1x56x64xbf16, #tpu.memory_space<vmem>>, vector<1x56x64xbf16>
    %4 = vector.shape_cast %3 : vector<1x56x64xbf16> to vector<56x64xbf16>
    %cst = arith.constant dense<0.000000e+00> : vector<512x64xf32>
    %5 = tpu.matmul %2, %4, %cst {dimension_numbers = #tpu.dot_dimension_numbers<[1], [0], [0], [1], [0, 0, 1, 1], [], []>} : vector<512x56xbf16>, vector<56x64xbf16>, vector<512x64xf32> -> vector<512x64xf32>
    %cst_6 = arith.constant 0.000000e+00 : f32
    %6 = vector.broadcast %cst_6 : f32 to vector<512x64xf32>
    %7 = arith.maximumf %5, %6 : vector<512x64xf32>
    %8 = vector.shape_cast %7 : vector<512x64xf32> to vector<8x64x64xf32>
    %cst_7 = arith.constant dense<0.000000e+00> : vector<8x64xf32>
    %9 = vector.multi_reduction <add>, %8, %cst_7 [1] : vector<8x64x64xf32> to vector<8x64xf32>
    %cst_8 = arith.constant 1.562500e-02 : f32
    %10 = vector.broadcast %cst_8 : f32 to vector<8x64xf32>
    %11 = arith.mulf %9, %10 : vector<8x64xf32>
    %12 = arith.truncf %11 : vector<8x64xf32> to vector<8x64xbf16>
    %c0_9 = arith.constant 0 : index
    %c0_10 = arith.constant 0 : index
    %c0_11 = arith.constant 0 : index
    %13 = vector.load %arg4[%c0_9, %c0_10, %c0_11] : memref<1x64x128xbf16, #tpu.memory_space<vmem>>, vector<1x64x128xbf16>
    %14 = vector.shape_cast %13 : vector<1x64x128xbf16> to vector<64x128xbf16>
    %cst_12 = arith.constant dense<0.000000e+00> : vector<8x128xf32>
    %15 = tpu.matmul %12, %14, %cst_12 {dimension_numbers = #tpu.dot_dimension_numbers<[1], [0], [0], [1], [0, 0, 1, 1], [], []>} : vector<8x64xbf16>, vector<64x128xbf16>, vector<8x128xf32> -> vector<8x128xf32>
    %c0_i32 = arith.constant 0 : i32
    %16 = arith.cmpi eq, %arg1, %c0_i32 : i32
    %17 = arith.extui %16 : i1 to i32
    %c0_i32_13 = arith.constant 0 : i32
    %18 = arith.cmpi ne, %17, %c0_i32_13 : i32
    scf.if %18 {
      %cst_18 = arith.constant 0.000000e+00 : f32
      %22 = vector.broadcast %cst_18 : f32 to vector<8x128xf32>
      %c0_19 = arith.constant 0 : index
      %c0_20 = arith.constant 0 : index
      %23 = vector.load %arg5[%c0_19, %c0_20] : memref<1x128xf32, #tpu.memory_space<vmem>>, vector<1x128xf32>
      %24 = vector.broadcast %23 : vector<1x128xf32> to vector<8x128xf32>
      %25 = arith.addf %22, %24 : vector<8x128xf32>
      %c0_21 = arith.constant 0 : index
      %c0_22 = arith.constant 0 : index
      %26 = vector.load %arg6[%c0_21, %c0_22] : memref<8x128xf32, #tpu.memory_space<vmem>>, vector<8x128xf32>
      tpu.vector_store %arg6[%c0_21, %c0_22], %25 {strides = array<i32>} : memref<8x128xf32, #tpu.memory_space<vmem>>, vector<8x128xf32>,
    } else {
    }
    %c0_14 = arith.constant 0 : index
    %c0_15 = arith.constant 0 : index
    %19 = vector.load %arg6[%c0_14, %c0_15] : memref<8x128xf32, #tpu.memory_space<vmem>>, vector<8x128xf32>
    %20 = arith.addf %19, %15 : vector<8x128xf32>
    %c0_16 = arith.constant 0 : index
    %c0_17 = arith.constant 0 : index
    %21 = vector.load %arg6[%c0_16, %c0_17] : memref<8x128xf32, #tpu.memory_space<vmem>>, vector<8x128xf32>
    tpu.vector_store %arg6[%c0_16, %c0_17], %20 {strides = array<i32>} : memref<8x128xf32, #tpu.memory_space<vmem>>, vector<8x128xf32>,
    return
  }
  func.func @transform_0(%arg0: i32, %arg1: i32) -> (i32, i32, i32, i32) {
    %c0_i32 = arith.constant 0 : i32
    %c0_i32_0 = arith.constant 0 : i32
    %c0_i32_1 = arith.constant 0 : i32
    return %arg1, %arg0, %c0_i32, %c0_i32_0 : i32, i32, i32, i32
  }
  func.func @transform_1(%arg0: i32, %arg1: i32) -> (i32, i32, i32) {
    %c0_i32 = arith.constant 0 : i32
    %c0_i32_0 = arith.constant 0 : i32
    %c0_i32_1 = arith.constant 0 : i32
    return %arg1, %c0_i32, %c0_i32_0 : i32, i32, i32
  }
  func.func @transform_2(%arg0: i32, %arg1: i32) -> (i32, i32, i32) {
    %c0_i32 = arith.constant 0 : i32
    %c0_i32_0 = arith.constant 0 : i32
    %c0_i32_1 = arith.constant 0 : i32
    return %arg1, %c0_i32, %c0_i32_0 : i32, i32, i32
  }
  func.func @transform_3(%arg0: i32, %arg1: i32) -> (i32, i32) {
    %c0_i32 = arith.constant 0 : i32
    %c0_i32_0 = arith.constant 0 : i32
    %c0_i32_1 = arith.constant 0 : i32
    return %c0_i32, %c0_i32_0 : i32, i32
  }
  func.func @transform_4(%arg0: i32, %arg1: i32) -> (i32, i32) {
    %c0_i32 = arith.constant 0 : i32
    %c0_i32_0 = arith.constant 0 : i32
    return %arg0, %c0_i32 : i32, i32
  }
}

</mosaic_0001>

<llo_original>
// kernel: tpu_custom_call.1
$region0: #{tpu_custom_call.1}
  #allocation0 [shape = 'u32[]', space=smem, size = 0x4, offset = 0x4, fixed_abs, tag = 'smem constant byte address 0x4 - core index']
  #allocation1 [shape = 'u32[144,128]{1,0:T(1,128)}', space=vmem, size = 0x12000, scoped, tag = 'internal scratch']
  %s0 = inlined_call_operand.vmem [shape: bf16[4,8,64,56], index: 0, kind: input, shape index: {}]
  %s1 = inlined_call_operand.vmem [shape: bf16[4,56,64], index: 1, kind: input, shape index: {}]
  %s2 = inlined_call_operand.vmem [shape: bf16[4,64,128], index: 2, kind: input, shape index: {}]
  %s3 = inlined_call_operand.vmem [shape: f32[1,128], index: 3, kind: input, shape index: {}]
  %s4 = inlined_call_operand.hbm [shape: f32[8,128], index: 4, kind: output, shape index: {}]
  %s5 = sld [smem:[#allocation0]]
  $region53: #{tpu_custom_call.1} parent=0
    _
  %s7 = ssub.s32 1, %s5
  %s8 = scalar_select 0, %s7, %s5
  $region1: #{tpu_custom_call.1} parent=0
    #allocation2 [shape = 'u8[4096]{0}', space=vmem, size = 0x1000, scoped, tag = 'output window, operand 0, single buffered']
    #allocation3 [shape = 's32[2]{0}', space=sflag, size = 0x8, scoped, tag = 'scoped memory for tpu_custom_call.1']
    %9 = vsyncpa [#allocation3], 0
    loop: start=0, step=1, limit=6
    $region2: #{tpu_custom_call.1} parent=1 // loop_pre_header
      _
    $region3: #{tpu_custom_call.1} parent=1 // loop_header
      %s11 = sphi 0, %s15
      %p12 = scmp.ge.s32.totalorder %s11, 6
      %s18 = sphi 0, %s30
      %s19 = sphi 0, %s26
      %s20 = sphi 0, %s18
      %s21 = sphi 0, %s19
      %s22 = sphi 0, %s20
      %s23 = sphi 0, %s21
      %s35 = sphi 0, %s37
      %s38 = sphi 0, %s35
      %s39 = sphi 0, %s38
      %s55 = sphi 0, %s39
      %s61 = sphi 0, %s63
      %s64 = sphi 0, %s61
      %s65 = sphi 0, %s64
      %s81 = sphi 0, %s65
      %s87 = sphi 0, %s89
      %s90 = sphi 0, %s87
      %s91 = sphi 0, %s90
      %s107 = sphi 0, %s91
      %s111 = sphi 0, %s111
      %s113 = sphi 0, %s111
      %s114 = sphi 0, %s113
      %s128 = sphi 0, %s114
      %s134 = sphi 0, %s136
      %s137 = sphi 0, %s134
      %s138 = sphi 0, %s137
      %s154 = sphi 0, %s138
    $region4: #{tpu_custom_call.1} parent=1 // loop_header_branch
      %14 = sbr.rel (%p12) target = $region8
    $region5: #{tpu_custom_call.1} parent=1 // loop_body
      %s16 = ssub.s32 %s11, 1
      %s17 = ssub.s32 %s11, 2
      %s24 = sadd.s32 1, %s19
      %p25 = scmp.ge.s32.totalorder %s24, 4
      %s26 = scalar_select %p25, 0, %s24
      %s27 = sadd.s32 1, %s18
      %s28 = scalar_select %p25, %s27, %s18
      %p29 = scmp.ge.s32.totalorder %s28, 1
      %s30 = scalar_select %p29, 0, %s28
      %s31 = ssub.s32 %s19, %s26
      %s32 = ssub.s32 %s18, %s30
      %s33 = sor.u32 %s31, %s32
      %p34 = scmp.eq.s32.totalorder %s33, 0
      %s36 = sadd.s32 %s35, 1
      %s37 = scalar_select %p34, %s35, %s36
      %p40 = pneg %p34
      %p41 = scmp.eq.s32.totalorder %s11, 3
      %p42 = por %p40, %p41
      %p43 = scmp.ne.s32.totalorder %s35, %s38
      %p44 = scmp.eq.s32.totalorder %s11, 0
      %p45 = por %p43, %p44
      %p46 = scmp.ne.s32.totalorder %s35, %s38
      %p47 = scmp.eq.s32.totalorder %s16, 3
      %p48 = por %p46, %p47
      %p49 = scmp.ne.s32.totalorder %s38, %s39
      %p50 = scmp.eq.s32.totalorder %s16, 0
      %p51 = por %p49, %p50
      %p52 = scmp.ne.s32.totalorder %s38, %s39
      %p53 = scmp.eq.s32.totalorder %s17, 3
      %p54 = por %p52, %p53
      %p56 = scmp.ne.s32.totalorder %s39, %s55
      %p57 = scmp.eq.s32.totalorder %s17, 0
      %p58 = por %p56, %p57
      %s59 = ssub.s32 %s19, %s26
      %p60 = scmp.eq.s32.totalorder %s59, 0
      %s62 = sadd.s32 %s61, 1
      %s63 = scalar_select %p60, %s61, %s62
      %p66 = pneg %p60
      %p67 = scmp.eq.s32.totalorder %s11, 3
      %p68 = por %p66, %p67
      %p69 = scmp.ne.s32.totalorder %s61, %s64
      %p70 = scmp.eq.s32.totalorder %s11, 0
      %p71 = por %p69, %p70
      %p72 = scmp.ne.s32.totalorder %s61, %s64
      %p73 = scmp.eq.s32.totalorder %s16, 3
      %p74 = por %p72, %p73
      %p75 = scmp.ne.s32.totalorder %s64, %s65
      %p76 = scmp.eq.s32.totalorder %s16, 0
      %p77 = por %p75, %p76
      %p78 = scmp.ne.s32.totalorder %s64, %s65
      %p79 = scmp.eq.s32.totalorder %s17, 3
      %p80 = por %p78, %p79
      %p82 = scmp.ne.s32.totalorder %s65, %s81
      %p83 = scmp.eq.s32.totalorder %s17, 0
      %p84 = por %p82, %p83
      %s85 = ssub.s32 %s19, %s26
      %p86 = scmp.eq.s32.totalorder %s85, 0
      %s88 = sadd.s32 %s87, 1
      %s89 = scalar_select %p86, %s87, %s88
      %p92 = pneg %p86
      %p93 = scmp.eq.s32.totalorder %s11, 3
      %p94 = por %p92, %p93
      %p95 = scmp.ne.s32.totalorder %s87, %s90
      %p96 = scmp.eq.s32.totalorder %s11, 0
      %p97 = por %p95, %p96
      %p98 = scmp.ne.s32.totalorder %s87, %s90
      %p99 = scmp.eq.s32.totalorder %s16, 3
      %p100 = por %p98, %p99
      %p101 = scmp.ne.s32.totalorder %s90, %s91
      %p102 = scmp.eq.s32.totalorder %s16, 0
      %p103 = por %p101, %p102
      %p104 = scmp.ne.s32.totalorder %s90, %s91
      %p105 = scmp.eq.s32.totalorder %s17, 3
      %p106 = por %p104, %p105
      %p108 = scmp.ne.s32.totalorder %s91, %s107
      %p109 = scmp.eq.s32.totalorder %s17, 0
      %p110 = por %p108, %p109
      %s112 = sadd.s32 %s111, 1
      %p115 = scmp.eq.s32.totalorder %s11, 3
      %p116 = scmp.ne.s32.totalorder %s111, %s113
      %p117 = scmp.eq.s32.totalorder %s11, 0
      %p118 = por %p116, %p117
      %p119 = scmp.ne.s32.totalorder %s111, %s113
      %p120 = scmp.eq.s32.totalorder %s16, 3
      %p121 = por %p119, %p120
      %p122 = scmp.ne.s32.totalorder %s113, %s114
      %p123 = scmp.eq.s32.totalorder %s16, 0
      %p124 = por %p122, %p123
      %p125 = scmp.ne.s32.totalorder %s113, %s114
      %p126 = scmp.eq.s32.totalorder %s17, 3
      %p127 = por %p125, %p126
      %p129 = scmp.ne.s32.totalorder %s114, %s128
      %p130 = scmp.eq.s32.totalorder %s17, 0
      %p131 = por %p129, %p130
      %s132 = ssub.s32 %s18, %s30
      %p133 = scmp.eq.s32.totalorder %s132, 0
      %s135 = sadd.s32 %s134, 1
      %s136 = scalar_select %p133, %s134, %s135
      %p139 = pneg %p133
      %p140 = scmp.eq.s32.totalorder %s11, 3
      %p141 = por %p139, %p140
      %p142 = scmp.ne.s32.totalorder %s134, %s137
      %p143 = scmp.eq.s32.totalorder %s11, 0
      %p144 = por %p142, %p143
      %p145 = scmp.ne.s32.totalorder %s134, %s137
      %p146 = scmp.eq.s32.totalorder %s16, 3
      %p147 = por %p145, %p146
      %p148 = scmp.ne.s32.totalorder %s137, %s138
      %p149 = scmp.eq.s32.totalorder %s16, 0
      %p150 = por %p148, %p149
      %p151 = scmp.ne.s32.totalorder %s137, %s138
      %p152 = scmp.eq.s32.totalorder %s17, 3
      %p153 = por %p151, %p152
      %p155 = scmp.ne.s32.totalorder %s138, %s154
      %p156 = scmp.eq.s32.totalorder %s17, 0
      %p157 = por %p155, %p156
      %p158 = scmp.le.s32.totalorder 1, %s11
      %p159 = scmp.lt.s32.totalorder %s11, 5
      %p160 = pnand %p158, %p159
      %p161 = pneg %p160
      // Predicated region
      $region9: #{tpu_custom_call.1} parent=5 // pred_check
        _
      $region10: #{tpu_custom_call.1} parent=5 // pred_check_branch
        %163 = sbr.rel (%p160) target = $region12
      $region11: #{tpu_custom_call.1} parent=5 // pred_region
        %s164 = ssub.s32 %s11, 1
        // Predicated region
        $region13: #{tpu_custom_call.1} parent=11 // pred_check
          %p165 = pneg %p124
        $region14: #{tpu_custom_call.1} parent=11 // pred_check_branch
          %167 = sbr.rel (%p165) target = $region16
        $region15: #{tpu_custom_call.1} parent=11 // pred_region
          _
        $region16: #{tpu_custom_call.1} parent=11 // pred_fallthru
          _
      $region12: #{tpu_custom_call.1} parent=5 // pred_fallthru
        _
      %p168 = scmp.lt.s32.totalorder %s11, 4
      // Predicated region
      $region17: #{tpu_custom_call.1} parent=5 // pred_check
        %p169 = pneg %p168
      $region18: #{tpu_custom_call.1} parent=5 // pred_check_branch
        %171 = sbr.rel (%p169) target = $region20
      $region19: #{tpu_custom_call.1} parent=5 // pred_region
        // Predicated region
        $region21: #{tpu_custom_call.1} parent=19 // pred_check
          %p172 = pneg %p45
        $region22: #{tpu_custom_call.1} parent=19 // pred_check_branch
          %174 = sbr.rel (%p172) target = $region24
        $region23: #{tpu_custom_call.1} parent=19 // pred_region
          %s175 = smul.u32 8, %s18
          %p176 = scmp.lt.s32.totalorder %s19, 3
          %s177 = scalar_select %p176, %s19, 3
          %p178 = scmp.lt.s32.totalorder %s175, 7
          %s179 = scalar_select %p178, %s175, 7
          %s180 = smul.addr %s179, 8
          %s181 = smul.addr %s177, 64
          %s182 = sadd.s32 %s180, %s181
          %s183 = smul.addr %s182, 4
          %s184 = scalar_lea.vmem %s0, %s183
          %s185 = smul.u32 8, %s18
        $region24: #{tpu_custom_call.1} parent=19 // pred_fallthru
          _
        // Predicated region
        $region25: #{tpu_custom_call.1} parent=19 // pred_check
          %p186 = pneg %p71
        $region26: #{tpu_custom_call.1} parent=19 // pred_check_branch
          %188 = sbr.rel (%p186) target = $region28
        $region27: #{tpu_custom_call.1} parent=19 // pred_region
          %p189 = scmp.lt.s32.totalorder %s19, 3
          %s190 = scalar_select %p189, %s19, 3
          %s191 = smul.addr %s190, 7
          %s192 = smul.addr %s191, 4
          %s193 = scalar_lea.vmem %s1, %s192
        $region28: #{tpu_custom_call.1} parent=19 // pred_fallthru
          _
        // Predicated region
        $region29: #{tpu_custom_call.1} parent=19 // pred_check
          %p194 = pneg %p97
        $region30: #{tpu_custom_call.1} parent=19 // pred_check_branch
          %196 = sbr.rel (%p194) target = $region32
        $region31: #{tpu_custom_call.1} parent=19 // pred_region
          %p197 = scmp.lt.s32.totalorder %s19, 3
          %s198 = scalar_select %p197, %s19, 3
          %s199 = smul.addr %s198, 8
          %s200 = smul.addr %s199, 4
          %s201 = scalar_lea.vmem %s2, %s200
        $region32: #{tpu_custom_call.1} parent=19 // pred_fallthru
          _
      $region20: #{tpu_custom_call.1} parent=5 // pred_fallthru
        _
      %p202 = scmp.le.s32.totalorder 1, %s11
      %p203 = scmp.lt.s32.totalorder %s11, 5
      %p204 = pnand %p202, %p203
      %p205 = pneg %p204
      // Predicated region
      $region33: #{tpu_custom_call.1} parent=5 // pred_check
        _
      $region34: #{tpu_custom_call.1} parent=5 // pred_check_branch
        %207 = sbr.rel (%p204) target = $region36
      $region35: #{tpu_custom_call.1} parent=5 // pred_region
        %s208 = ssub.s32 %s11, 1
        %s209 = smul.u32 8, %s20
        %p210 = scmp.lt.s32.totalorder %s21, 3
        %s211 = scalar_select %p210, %s21, 3
        %p212 = scmp.lt.s32.totalorder %s209, 7
        %s213 = scalar_select %p212, %s209, 7
        %s214 = smul.addr %s213, 8
        %s215 = smul.addr %s211, 64
        %s216 = sadd.s32 %s214, %s215
        %s217 = smul.addr %s216, 4
        %s218 = scalar_lea.vmem %s0, %s217
        %p219 = pneg %p51
        %p220 = pneg %p48
        %p221 = scmp.lt.s32.totalorder %s21, 3
        %s222 = scalar_select %p221, %s21, 3
        %s223 = smul.addr %s222, 7
        %s224 = smul.addr %s223, 4
        %s225 = scalar_lea.vmem %s1, %s224
        %p226 = pneg %p77
        %p227 = pneg %p74
        %p228 = scmp.lt.s32.totalorder %s21, 3
        %s229 = scalar_select %p228, %s21, 3
        %s230 = smul.addr %s229, 8
        %s231 = smul.addr %s230, 4
        %s232 = scalar_lea.vmem %s2, %s231
        %p233 = pneg %p103
        %p234 = pneg %p100
        %p235 = pneg %p124
        %p236 = pneg %p121
        %p237 = pneg %p150
        %p238 = pneg %p147
        %s239 = smul.u32 8, %s20
        %p240 = scmp.lt.s32.totalorder %s21, 3
        %s241 = scalar_select %p240, %s21, 3
        %p242 = scmp.lt.s32.totalorder %s239, 7
        %s243 = scalar_select %p242, %s239, 7
        %s244 = smul.addr %s243, 8
        %s245 = smul.addr %s241, 64
        %s246 = sadd.s32 %s244, %s245
        %s247 = smul.addr %s246, 4
        %s248 = scalar_lea.vmem %s0, %s247
        %s249 = smul.u32 8, %s20
        %p250 = scmp.lt.s32.totalorder %s21, 3
        %s251 = scalar_select %p250, %s21, 3
        %s252 = smul.addr %s251, 7
        %s253 = smul.addr %s252, 4
        %s254 = scalar_lea.vmem %s1, %s253
        %p255 = scmp.lt.s32.totalorder %s21, 3
        %s256 = scalar_select %p255, %s21, 3
        %s257 = smul.addr %s256, 8
        %s258 = smul.addr %s257, 4
        %s259 = scalar_lea.vmem %s2, %s258
        %v261 = vld [vmem:[%s248] sm:$0xf]
        %v262 = vld [vmem:[%s248 + $0x4] sm:$0xf]
        %v263 = vld [vmem:[%s248 + $0x8] sm:$0xf]
        %v264 = vld [vmem:[%s248 + $0xc] sm:$0xf]
        %v265 = vld [vmem:[%s248 + $0x10] sm:$0xf]
        %v266 = vld [vmem:[%s248 + $0x14] sm:$0xf]
        %v267 = vld [vmem:[%s248 + $0x18] sm:$0xf]
        %v268 = vld [vmem:[%s248 + $0x1c] sm:$0xf]
        %v269 = vld [vmem:[%s248 + $0x20] sm:$0xf]
        %v270 = vld [vmem:[%s248 + $0x24] sm:$0xf]
        %v271 = vld [vmem:[%s248 + $0x28] sm:$0xf]
        %v272 = vld [vmem:[%s248 + $0x2c] sm:$0xf]
        %v273 = vld [vmem:[%s248 + $0x30] sm:$0xf]
        %v274 = vld [vmem:[%s248 + $0x34] sm:$0xf]
        %v275 = vld [vmem:[%s248 + $0x38] sm:$0xf]
        %v276 = vld [vmem:[%s248 + $0x3c] sm:$0xf]
        %v277 = vld [vmem:[%s248 + $0x40] sm:$0xf]
        %v278 = vld [vmem:[%s248 + $0x44] sm:$0xf]
        %v279 = vld [vmem:[%s248 + $0x48] sm:$0xf]
        %v280 = vld [vmem:[%s248 + $0x4c] sm:$0xf]
        %v281 = vld [vmem:[%s248 + $0x50] sm:$0xf]
        %v282 = vld [vmem:[%s248 + $0x54] sm:$0xf]
        %v283 = vld [vmem:[%s248 + $0x58] sm:$0xf]
        %v284 = vld [vmem:[%s248 + $0x5c] sm:$0xf]
        %v285 = vld [vmem:[%s248 + $0x60] sm:$0xf]
        %v286 = vld [vmem:[%s248 + $0x64] sm:$0xf]
        %v287 = vld [vmem:[%s248 + $0x68] sm:$0xf]
        %v288 = vld [vmem:[%s248 + $0x6c] sm:$0xf]
        %v289 = vld [vmem:[%s248 + $0x70] sm:$0xf]
        %v290 = vld [vmem:[%s248 + $0x74] sm:$0xf]
        %v291 = vld [vmem:[%s248 + $0x78] sm:$0xf]
        %v292 = vld [vmem:[%s248 + $0x7c] sm:$0xf]
        %v293 = vld [vmem:[%s248 + $0x80] sm:$0xf]
        %v294 = vld [vmem:[%s248 + $0x84] sm:$0xf]
        %v295 = vld [vmem:[%s248 + $0x88] sm:$0xf]
        %v296 = vld [vmem:[%s248 + $0x8c] sm:$0xf]
        %v297 = vld [vmem:[%s248 + $0x90] sm:$0xf]
        %v298 = vld [vmem:[%s248 + $0x94] sm:$0xf]
        %v299 = vld [vmem:[%s248 + $0x98] sm:$0xf]
        %v300 = vld [vmem:[%s248 + $0x9c] sm:$0xf]
        %v301 = vld [vmem:[%s248 + $0xa0] sm:$0xf]
        %v302 = vld [vmem:[%s248 + $0xa4] sm:$0xf]
        %v303 = vld [vmem:[%s248 + $0xa8] sm:$0xf]
        %v304 = vld [vmem:[%s248 + $0xac] sm:$0xf]
        %v305 = vld [vmem:[%s248 + $0xb0] sm:$0xf]
        %v306 = vld [vmem:[%s248 + $0xb4] sm:$0xf]
        %v307 = vld [vmem:[%s248 + $0xb8] sm:$0xf]
        %v308 = vld [vmem:[%s248 + $0xbc] sm:$0xf]
        %v309 = vld [vmem:[%s248 + $0xc0] sm:$0xf]
        %v310 = vld [vmem:[%s248 + $0xc4] sm:$0xf]
        %v311 = vld [vmem:[%s248 + $0xc8] sm:$0xf]
        %v312 = vld [vmem:[%s248 + $0xcc] sm:$0xf]
        %v313 = vld [vmem:[%s248 + $0xd0] sm:$0xf]
        %v314 = vld [vmem:[%s248 + $0xd4] sm:$0xf]
        %v315 = vld [vmem:[%s248 + $0xd8] sm:$0xf]
        %v316 = vld [vmem:[%s248 + $0xdc] sm:$0xf]
        %v317 = vld [vmem:[%s248 + $0xe0] sm:$0xf]
        %v318 = vld [vmem:[%s248 + $0xe4] sm:$0xf]
        %v319 = vld [vmem:[%s248 + $0xe8] sm:$0xf]
        %v320 = vld [vmem:[%s248 + $0xec] sm:$0xf]
        %v321 = vld [vmem:[%s248 + $0xf0] sm:$0xf]
        %v322 = vld [vmem:[%s248 + $0xf4] sm:$0xf]
        %v323 = vld [vmem:[%s248 + $0xf8] sm:$0xf]
        %v324 = vld [vmem:[%s248 + $0xfc] sm:$0xf]
        %v325 = vld [vmem:[%s254] sm:$0xf]
        %v326 = vld [vmem:[%s254 + $0x4] sm:$0xf]
        %v327 = vld [vmem:[%s254 + $0x8] sm:$0xf]
        %v328 = vld [vmem:[%s254 + $0xc] sm:$0xf]
        %v329 = vld [vmem:[%s254 + $0x10] sm:$0xf]
        %v330 = vld [vmem:[%s254 + $0x14] sm:$0xf]
        %v331 = vld [vmem:[%s254 + $0x18] sm:$0xf]
        %v396 = vunpack.c.l.b16 %v261
        %v397 = vunpack.c.l.b16 %v262
        %v398 = vunpack.c.l.b16 %v263
        %v399 = vunpack.c.l.b16 %v264
        %v400 = vunpack.c.l.b16 %v265
        %v401 = vunpack.c.l.b16 %v266
        %v402 = vunpack.c.l.b16 %v267
        %v403 = vunpack.c.l.b16 %v268
        %v404 = vunpack.c.l.b16 %v269
        %v405 = vunpack.c.l.b16 %v270
        %v406 = vunpack.c.l.b16 %v271
        %v407 = vunpack.c.l.b16 %v272
        %v408 = vunpack.c.l.b16 %v273
        %v409 = vunpack.c.l.b16 %v274
        %v410 = vunpack.c.l.b16 %v275
        %v411 = vunpack.c.l.b16 %v276
        %v412 = vunpack.c.l.b16 %v277
        %v413 = vunpack.c.l.b16 %v278
        %v414 = vunpack.c.l.b16 %v279
        %v415 = vunpack.c.l.b16 %v280
        %v416 = vunpack.c.l.b16 %v281
        %v417 = vunpack.c.l.b16 %v282
        %v418 = vunpack.c.l.b16 %v283
        %v419 = vunpack.c.l.b16 %v284
        %v420 = vunpack.c.l.b16 %v285
        %v421 = vunpack.c.l.b16 %v286
        %v422 = vunpack.c.l.b16 %v287
        %v423 = vunpack.c.l.b16 %v288
        %v424 = vunpack.c.l.b16 %v289
        %v425 = vunpack.c.l.b16 %v290
        %v426 = vunpack.c.l.b16 %v291
        %v427 = vunpack.c.l.b16 %v292
        %v428 = vunpack.c.l.b16 %v293
        %v429 = vunpack.c.l.b16 %v294
        %v430 = vunpack.c.l.b16 %v295
        %v431 = vunpack.c.l.b16 %v296
        %v432 = vunpack.c.l.b16 %v297
        %v433 = vunpack.c.l.b16 %v298
        %v434 = vunpack.c.l.b16 %v299
        %v435 = vunpack.c.l.b16 %v300
        %v436 = vunpack.c.l.b16 %v301
        %v437 = vunpack.c.l.b16 %v302
        %v438 = vunpack.c.l.b16 %v303
        %v439 = vunpack.c.l.b16 %v304
        %v440 = vunpack.c.l.b16 %v305
        %v441 = vunpack.c.l.b16 %v306
        %v442 = vunpack.c.l.b16 %v307
        %v443 = vunpack.c.l.b16 %v308
        %v444 = vunpack.c.l.b16 %v309
        %v445 = vunpack.c.l.b16 %v310
        %v446 = vunpack.c.l.b16 %v311
        %v447 = vunpack.c.l.b16 %v312
        %v448 = vunpack.c.l.b16 %v313
        %v449 = vunpack.c.l.b16 %v314
        %v450 = vunpack.c.l.b16 %v315
        %v451 = vunpack.c.l.b16 %v316
        %v452 = vunpack.c.l.b16 %v317
        %v453 = vunpack.c.l.b16 %v318
        %v454 = vunpack.c.l.b16 %v319
        %v455 = vunpack.c.l.b16 %v320
        %v456 = vunpack.c.l.b16 %v321
        %v457 = vunpack.c.l.b16 %v322
        %v458 = vunpack.c.l.b16 %v323
        %v459 = vunpack.c.l.b16 %v324
        %v460 = vpack.c.b16 %v397, %v396
        %v461 = vpack.c.b16 %v399, %v398
        %v462 = vpack.c.b16 %v401, %v400
        %v463 = vpack.c.b16 %v403, %v402
        %v464 = vpack.c.b16 %v405, %v404
        %v465 = vpack.c.b16 %v407, %v406
        %v466 = vpack.c.b16 %v409, %v408
        %v467 = vpack.c.b16 %v411, %v410
        %v468 = vpack.c.b16 %v413, %v412
        %v469 = vpack.c.b16 %v415, %v414
        %v470 = vpack.c.b16 %v417, %v416
        %v471 = vpack.c.b16 %v419, %v418
        %v472 = vpack.c.b16 %v421, %v420
        %v473 = vpack.c.b16 %v423, %v422
        %v474 = vpack.c.b16 %v425, %v424
        %v475 = vpack.c.b16 %v427, %v426
        %v476 = vpack.c.b16 %v429, %v428
        %v477 = vpack.c.b16 %v431, %v430
        %v478 = vpack.c.b16 %v433, %v432
        %v479 = vpack.c.b16 %v435, %v434
        %v480 = vpack.c.b16 %v437, %v436
        %v481 = vpack.c.b16 %v439, %v438
        %v482 = vpack.c.b16 %v441, %v440
        %v483 = vpack.c.b16 %v443, %v442
        %v484 = vpack.c.b16 %v445, %v444
        %v485 = vpack.c.b16 %v447, %v446
        %v486 = vpack.c.b16 %v449, %v448
        %v487 = vpack.c.b16 %v451, %v450
        %v488 = vpack.c.b16 %v453, %v452
        %v489 = vpack.c.b16 %v455, %v454
        %v490 = vpack.c.b16 %v457, %v456
        %v491 = vpack.c.b16 %v459, %v458
        %v499 = vunpack.c.l.b16 %v325
        %v500 = vunpack.c.l.b16 %v326
        %v501 = vunpack.c.l.b16 %v327
        %v502 = vunpack.c.l.b16 %v328
        %v503 = vunpack.c.l.b16 %v329
        %v504 = vunpack.c.l.b16 %v330
        %v505 = vunpack.c.l.b16 %v331
        %v506 = vpack.c.b16 %v500, %v499
        %v507 = vpack.c.b16 %v502, %v501
        %v508 = vpack.c.b16 %v504, %v503
        %v509 = vpack.c.b16 %v505, %v505
        %vm513 = vcmask 457728
        %v515 = vsel %vm513, %v460, 0
        %v518 = vsel %vm513, %v461, 0
        %v521 = vsel %vm513, %v462, 0
        %v524 = vsel %vm513, %v463, 0
        %v527 = vsel %vm513, %v464, 0
        %v530 = vsel %vm513, %v465, 0
        %v533 = vsel %vm513, %v466, 0
        %v536 = vsel %vm513, %v467, 0
        %v539 = vsel %vm513, %v468, 0
        %v542 = vsel %vm513, %v469, 0
        %v545 = vsel %vm513, %v470, 0
        %v548 = vsel %vm513, %v471, 0
        %v551 = vsel %vm513, %v472, 0
        %v554 = vsel %vm513, %v473, 0
        %v557 = vsel %vm513, %v474, 0
        %v560 = vsel %vm513, %v475, 0
        %v563 = vsel %vm513, %v476, 0
        %v566 = vsel %vm513, %v477, 0
        %v569 = vsel %vm513, %v478, 0
        %v572 = vsel %vm513, %v479, 0
        %v575 = vsel %vm513, %v480, 0
        %v578 = vsel %vm513, %v481, 0
        %v581 = vsel %vm513, %v482, 0
        %v584 = vsel %vm513, %v483, 0
        %v587 = vsel %vm513, %v484, 0
        %v590 = vsel %vm513, %v485, 0
        %v593 = vsel %vm513, %v486, 0
        %v596 = vsel %vm513, %v487, 0
        %v599 = vsel %vm513, %v488, 0
        %v602 = vsel %vm513, %v489, 0
        %v605 = vsel %vm513, %v490, 0
        %v608 = vsel %vm513, %v491, 0
        %vm610 = vcmask 1043456
        %v612 = vsel %vm610, %v509, 0
        %614 = vmatprep.subr.bf16.mxu0 0
        %615 = vmatpush1.bf16.msra.mxu0 0
        %616 = vmatprep.subr.bf16.mxu0 0
        %617 = vmatpush1.bf16.msra.mxu0 0
        %618 = vmatprep.subr.bf16.mxu0 0
        %619 = vmatpush1.bf16.msra.mxu0 0
        %620 = vmatprep.subr.bf16.mxu0 0
        %621 = vmatpush1.bf16.msra.mxu0 0
        %622 = vmatprep.subr.bf16.mxu0 0
        %623 = vmatpush1.bf16.msra.mxu0 %v612
        %624 = vmatprep.subr.bf16.mxu0 0
        %625 = vmatpush1.bf16.msra.mxu0 %v508
        %626 = vmatprep.subr.bf16.mxu0 0
        %627 = vmatpush1.bf16.msra.mxu0 %v507
        %628 = vmatprep.subr.bf16.mxu0 0
        %629 = vmatpush1.bf16.msra.mxu0 %v506
        %630 = vmatprep.subr.bf16.mxu0 0
        %631 = vmatpush2.bf16.msra.mxu0 0
        %632 = vmatprep.subr.bf16.mxu0 0
        %633 = vmatpush2.bf16.msra.mxu0 0
        %634 = vmatprep.subr.bf16.mxu0 0
        %635 = vmatpush2.bf16.msra.mxu0 0
        %636 = vmatprep.subr.bf16.mxu0 0
        %637 = vmatpush2.bf16.msra.mxu0 0
        %638 = vmatprep.subr.bf16.mxu0 0
        %639 = vmatpush2.bf16.msra.mxu0 0
        %640 = vmatprep.subr.bf16.mxu0 0
        %641 = vmatpush2.bf16.msra.mxu0 0
        %642 = vmatprep.subr.bf16.mxu0 0
        %643 = vmatpush2.bf16.msra.mxu0 0
        %644 = vmatprep.subr.bf16.mxu0 0
        %645 = vmatpush2.bf16.msra.mxu0 0
        %646 = vmatprep.mubr.bf16.mxu0 0
        %647 = vmatmul.mubr.bf16.gmra.mxu0 %v515
        %v648 = vpop.f32.mrf.mxu0
        %v649 = vadd.f32 0.0, %v648
        %v650 = vpop.f32.mrf.mxu0
        %v651 = vpop.f32.mrf.mxu0
        %v652 = vadd.f32 0.0, %v651
        %v653 = vpop.f32.mrf.mxu0
        %654 = vmatprep.mubr.bf16.mxu0 0
        %655 = vmatmul.mubr.bf16.gmra.mxu0 %v518
        %v656 = vpop.f32.mrf.mxu0
        %v657 = vadd.f32 0.0, %v656
        %v658 = vpop.f32.mrf.mxu0
        %v659 = vpop.f32.mrf.mxu0
        %v660 = vadd.f32 0.0, %v659
        %v661 = vpop.f32.mrf.mxu0
        %662 = vmatprep.mubr.bf16.mxu0 0
        %663 = vmatmul.mubr.bf16.gmra.mxu0 %v521
        %v664 = vpop.f32.mrf.mxu0
        %v665 = vadd.f32 0.0, %v664
        %v666 = vpop.f32.mrf.mxu0
        %v667 = vpop.f32.mrf.mxu0
        %v668 = vadd.f32 0.0, %v667
        %v669 = vpop.f32.mrf.mxu0
        %670 = vmatprep.mubr.bf16.mxu0 0
        %671 = vmatmul.mubr.bf16.gmra.mxu0 %v524
        %v672 = vpop.f32.mrf.mxu0
        %v673 = vadd.f32 0.0, %v672
        %v674 = vpop.f32.mrf.mxu0
        %v675 = vpop.f32.mrf.mxu0
        %v676 = vadd.f32 0.0, %v675
        %v677 = vpop.f32.mrf.mxu0
        %678 = vmatprep.mubr.bf16.mxu0 0
        %679 = vmatmul.mubr.bf16.gmra.mxu0 %v527
        %v680 = vpop.f32.mrf.mxu0
        %v681 = vadd.f32 0.0, %v680
        %v682 = vpop.f32.mrf.mxu0
        %v683 = vpop.f32.mrf.mxu0
        %v684 = vadd.f32 0.0, %v683
        %v685 = vpop.f32.mrf.mxu0
        %686 = vmatprep.mubr.bf16.mxu0 0
        %687 = vmatmul.mubr.bf16.gmra.mxu0 %v530
        %v688 = vpop.f32.mrf.mxu0
        %v689 = vadd.f32 0.0, %v688
        %v690 = vpop.f32.mrf.mxu0
        %v691 = vpop.f32.mrf.mxu0
        %v692 = vadd.f32 0.0, %v691
        %v693 = vpop.f32.mrf.mxu0
        %694 = vmatprep.mubr.bf16.mxu0 0
        %695 = vmatmul.mubr.bf16.gmra.mxu0 %v533
        %v696 = vpop.f32.mrf.mxu0
        %v697 = vadd.f32 0.0, %v696
        %v698 = vpop.f32.mrf.mxu0
        %v699 = vpop.f32.mrf.mxu0
        %v700 = vadd.f32 0.0, %v699
        %v701 = vpop.f32.mrf.mxu0
        %702 = vmatprep.mubr.bf16.mxu0 0
        %703 = vmatmul.mubr.bf16.gmra.mxu0 %v536
        %v704 = vpop.f32.mrf.mxu0
        %v705 = vadd.f32 0.0, %v704
        %v706 = vpop.f32.mrf.mxu0
        %v707 = vpop.f32.mrf.mxu0
        %v708 = vadd.f32 0.0, %v707
        %v709 = vpop.f32.mrf.mxu0
        %710 = vmatprep.mubr.bf16.mxu0 0
        %711 = vmatmul.mubr.bf16.gmra.mxu0 %v539
        %v712 = vpop.f32.mrf.mxu0
        %v713 = vadd.f32 0.0, %v712
        %v714 = vpop.f32.mrf.mxu0
        %v715 = vpop.f32.mrf.mxu0
        %v716 = vadd.f32 0.0, %v715
        %v717 = vpop.f32.mrf.mxu0
        %718 = vmatprep.mubr.bf16.mxu0 0
        %719 = vmatmul.mubr.bf16.gmra.mxu0 %v542
        %v720 = vpop.f32.mrf.mxu0
        %v721 = vadd.f32 0.0, %v720
        %v722 = vpop.f32.mrf.mxu0
        %v723 = vpop.f32.mrf.mxu0
        %v724 = vadd.f32 0.0, %v723
        %v725 = vpop.f32.mrf.mxu0
        %726 = vmatprep.mubr.bf16.mxu0 0
        %727 = vmatmul.mubr.bf16.gmra.mxu0 %v545
        %v728 = vpop.f32.mrf.mxu0
        %v729 = vadd.f32 0.0, %v728
        %v730 = vpop.f32.mrf.mxu0
        %v731 = vpop.f32.mrf.mxu0
        %v732 = vadd.f32 0.0, %v731
        %v733 = vpop.f32.mrf.mxu0
        %734 = vmatprep.mubr.bf16.mxu0 0
        %735 = vmatmul.mubr.bf16.gmra.mxu0 %v548
        %v736 = vpop.f32.mrf.mxu0
        %v737 = vadd.f32 0.0, %v736
        %v738 = vpop.f32.mrf.mxu0
        %v739 = vpop.f32.mrf.mxu0
        %v740 = vadd.f32 0.0, %v739
        %v741 = vpop.f32.mrf.mxu0
        %742 = vmatprep.mubr.bf16.mxu0 0
        %743 = vmatmul.mubr.bf16.gmra.mxu0 %v551
        %v744 = vpop.f32.mrf.mxu0
        %v745 = vadd.f32 0.0, %v744
        %v746 = vpop.f32.mrf.mxu0
        %v747 = vpop.f32.mrf.mxu0
        %v748 = vadd.f32 0.0, %v747
        %v749 = vpop.f32.mrf.mxu0
        %750 = vmatprep.mubr.bf16.mxu0 0
        %751 = vmatmul.mubr.bf16.gmra.mxu0 %v554
        %v752 = vpop.f32.mrf.mxu0
        %v753 = vadd.f32 0.0, %v752
        %v754 = vpop.f32.mrf.mxu0
        %v755 = vpop.f32.mrf.mxu0
        %v756 = vadd.f32 0.0, %v755
        %v757 = vpop.f32.mrf.mxu0
        %758 = vmatprep.mubr.bf16.mxu0 0
        %759 = vmatmul.mubr.bf16.gmra.mxu0 %v557
        %v760 = vpop.f32.mrf.mxu0
        %v761 = vadd.f32 0.0, %v760
        %v762 = vpop.f32.mrf.mxu0
        %v763 = vpop.f32.mrf.mxu0
        %v764 = vadd.f32 0.0, %v763
        %v765 = vpop.f32.mrf.mxu0
        %766 = vmatprep.mubr.bf16.mxu0 0
        %767 = vmatmul.mubr.bf16.gmra.mxu0 %v560
        %v768 = vpop.f32.mrf.mxu0
        %v769 = vadd.f32 0.0, %v768
        %v770 = vpop.f32.mrf.mxu0
        %v771 = vpop.f32.mrf.mxu0
        %v772 = vadd.f32 0.0, %v771
        %v773 = vpop.f32.mrf.mxu0
        %774 = vmatprep.mubr.bf16.mxu0 0
        %775 = vmatmul.mubr.bf16.gmra.mxu0 %v563
        %v776 = vpop.f32.mrf.mxu0
        %v777 = vadd.f32 0.0, %v776
        %v778 = vpop.f32.mrf.mxu0
        %v779 = vpop.f32.mrf.mxu0
        %v780 = vadd.f32 0.0, %v779
        %v781 = vpop.f32.mrf.mxu0
        %782 = vmatprep.mubr.bf16.mxu0 0
        %783 = vmatmul.mubr.bf16.gmra.mxu0 %v566
        %v784 = vpop.f32.mrf.mxu0
        %v785 = vadd.f32 0.0, %v784
        %v786 = vpop.f32.mrf.mxu0
        %v787 = vpop.f32.mrf.mxu0
        %v788 = vadd.f32 0.0, %v787
        %v789 = vpop.f32.mrf.mxu0
        %790 = vmatprep.mubr.bf16.mxu0 0
        %791 = vmatmul.mubr.bf16.gmra.mxu0 %v569
        %v792 = vpop.f32.mrf.mxu0
        %v793 = vadd.f32 0.0, %v792
        %v794 = vpop.f32.mrf.mxu0
        %v795 = vpop.f32.mrf.mxu0
        %v796 = vadd.f32 0.0, %v795
        %v797 = vpop.f32.mrf.mxu0
        %798 = vmatprep.mubr.bf16.mxu0 0
        %799 = vmatmul.mubr.bf16.gmra.mxu0 %v572
        %v800 = vpop.f32.mrf.mxu0
        %v801 = vadd.f32 0.0, %v800
        %v802 = vpop.f32.mrf.mxu0
        %v803 = vpop.f32.mrf.mxu0
        %v804 = vadd.f32 0.0, %v803
        %v805 = vpop.f32.mrf.mxu0
        %806 = vmatprep.mubr.bf16.mxu0 0
        %807 = vmatmul.mubr.bf16.gmra.mxu0 %v575
        %v808 = vpop.f32.mrf.mxu0
        %v809 = vadd.f32 0.0, %v808
        %v810 = vpop.f32.mrf.mxu0
        %v811 = vpop.f32.mrf.mxu0
        %v812 = vadd.f32 0.0, %v811
        %v813 = vpop.f32.mrf.mxu0
        %814 = vmatprep.mubr.bf16.mxu0 0
        %815 = vmatmul.mubr.bf16.gmra.mxu0 %v578
        %v816 = vpop.f32.mrf.mxu0
        %v817 = vadd.f32 0.0, %v816
        %v818 = vpop.f32.mrf.mxu0
        %v819 = vpop.f32.mrf.mxu0
        %v820 = vadd.f32 0.0, %v819
        %v821 = vpop.f32.mrf.mxu0
        %822 = vmatprep.mubr.bf16.mxu0 0
        %823 = vmatmul.mubr.bf16.gmra.mxu0 %v581
        %v824 = vpop.f32.mrf.mxu0
        %v825 = vadd.f32 0.0, %v824
        %v826 = vpop.f32.mrf.mxu0
        %v827 = vpop.f32.mrf.mxu0
        %v828 = vadd.f32 0.0, %v827
        %v829 = vpop.f32.mrf.mxu0
        %830 = vmatprep.mubr.bf16.mxu0 0
        %831 = vmatmul.mubr.bf16.gmra.mxu0 %v584
        %v832 = vpop.f32.mrf.mxu0
        %v833 = vadd.f32 0.0, %v832
        %v834 = vpop.f32.mrf.mxu0
        %v835 = vpop.f32.mrf.mxu0
        %v836 = vadd.f32 0.0, %v835
        %v837 = vpop.f32.mrf.mxu0
        %838 = vmatprep.mubr.bf16.mxu0 0
        %839 = vmatmul.mubr.bf16.gmra.mxu0 %v587
        %v840 = vpop.f32.mrf.mxu0
        %v841 = vadd.f32 0.0, %v840
        %v842 = vpop.f32.mrf.mxu0
        %v843 = vpop.f32.mrf.mxu0
        %v844 = vadd.f32 0.0, %v843
        %v845 = vpop.f32.mrf.mxu0
        %846 = vmatprep.mubr.bf16.mxu0 0
        %847 = vmatmul.mubr.bf16.gmra.mxu0 %v590
        %v848 = vpop.f32.mrf.mxu0
        %v849 = vadd.f32 0.0, %v848
        %v850 = vpop.f32.mrf.mxu0
        %v851 = vpop.f32.mrf.mxu0
        %v852 = vadd.f32 0.0, %v851
        %v853 = vpop.f32.mrf.mxu0
        %854 = vmatprep.mubr.bf16.mxu0 0
        %855 = vmatmul.mubr.bf16.gmra.mxu0 %v593
        %v856 = vpop.f32.mrf.mxu0
        %v857 = vadd.f32 0.0, %v856
        %v858 = vpop.f32.mrf.mxu0
        %v859 = vpop.f32.mrf.mxu0
        %v860 = vadd.f32 0.0, %v859
        %v861 = vpop.f32.mrf.mxu0
        %862 = vmatprep.mubr.bf16.mxu0 0
        %863 = vmatmul.mubr.bf16.gmra.mxu0 %v596
        %v864 = vpop.f32.mrf.mxu0
        %v865 = vadd.f32 0.0, %v864
        %v866 = vpop.f32.mrf.mxu0
        %v867 = vpop.f32.mrf.mxu0
        %v868 = vadd.f32 0.0, %v867
        %v869 = vpop.f32.mrf.mxu0
        %870 = vmatprep.mubr.bf16.mxu0 0
        %871 = vmatmul.mubr.bf16.gmra.mxu0 %v599
        %v872 = vpop.f32.mrf.mxu0
        %v873 = vadd.f32 0.0, %v872
        %v874 = vpop.f32.mrf.mxu0
        %v875 = vpop.f32.mrf.mxu0
        %v876 = vadd.f32 0.0, %v875
        %v877 = vpop.f32.mrf.mxu0
        %878 = vmatprep.mubr.bf16.mxu0 0
        %879 = vmatmul.mubr.bf16.gmra.mxu0 %v602
        %v880 = vpop.f32.mrf.mxu0
        %v881 = vadd.f32 0.0, %v880
        %v882 = vpop.f32.mrf.mxu0
        %v883 = vpop.f32.mrf.mxu0
        %v884 = vadd.f32 0.0, %v883
        %v885 = vpop.f32.mrf.mxu0
        %886 = vmatprep.mubr.bf16.mxu0 0
        %887 = vmatmul.mubr.bf16.gmra.mxu0 %v605
        %v888 = vpop.f32.mrf.mxu0
        %v889 = vadd.f32 0.0, %v888
        %v890 = vpop.f32.mrf.mxu0
        %v891 = vpop.f32.mrf.mxu0
        %v892 = vadd.f32 0.0, %v891
        %v893 = vpop.f32.mrf.mxu0
        %894 = vmatprep.mubr.bf16.mxu0 0
        %895 = vmatmul.mubr.bf16.gmra.mxu0 %v608
        %v896 = vpop.f32.mrf.mxu0
        %v897 = vadd.f32 0.0, %v896
        %v898 = vpop.f32.mrf.mxu0
        %v899 = vpop.f32.mrf.mxu0
        %v900 = vadd.f32 0.0, %v899
        %v901 = vpop.f32.mrf.mxu0
        %902 = vdwg.mxu0
        %v903 = vmax.f32 %v649, 0.0
        %v904 = vmax.f32 %v652, 0.0
        %v905 = vmax.f32 %v657, 0.0
        %v906 = vmax.f32 %v660, 0.0
        %v907 = vmax.f32 %v665, 0.0
        %v908 = vmax.f32 %v668, 0.0
        %v909 = vmax.f32 %v673, 0.0
        %v910 = vmax.f32 %v676, 0.0
        %v911 = vmax.f32 %v681, 0.0
        %v912 = vmax.f32 %v684, 0.0
        %v913 = vmax.f32 %v689, 0.0
        %v914 = vmax.f32 %v692, 0.0
        %v915 = vmax.f32 %v697, 0.0
        %v916 = vmax.f32 %v700, 0.0
        %v917 = vmax.f32 %v705, 0.0
        %v918 = vmax.f32 %v708, 0.0
        %v919 = vmax.f32 %v713, 0.0
        %v920 = vmax.f32 %v716, 0.0
        %v921 = vmax.f32 %v721, 0.0
        %v922 = vmax.f32 %v724, 0.0
        %v923 = vmax.f32 %v729, 0.0
        %v924 = vmax.f32 %v732, 0.0
        %v925 = vmax.f32 %v737, 0.0
        %v926 = vmax.f32 %v740, 0.0
        %v927 = vmax.f32 %v745, 0.0
        %v928 = vmax.f32 %v748, 0.0
        %v929 = vmax.f32 %v753, 0.0
        %v930 = vmax.f32 %v756, 0.0
        %v931 = vmax.f32 %v761, 0.0
        %v932 = vmax.f32 %v764, 0.0
        %v933 = vmax.f32 %v769, 0.0
        %v934 = vmax.f32 %v772, 0.0
        %v935 = vmax.f32 %v777, 0.0
        %v936 = vmax.f32 %v780, 0.0
        %v937 = vmax.f32 %v785, 0.0
        %v938 = vmax.f32 %v788, 0.0
        %v939 = vmax.f32 %v793, 0.0
        %v940 = vmax.f32 %v796, 0.0
        %v941 = vmax.f32 %v801, 0.0
        %v942 = vmax.f32 %v804, 0.0
        %v943 = vmax.f32 %v809, 0.0
        %v944 = vmax.f32 %v812, 0.0
        %v945 = vmax.f32 %v817, 0.0
        %v946 = vmax.f32 %v820, 0.0
        %v947 = vmax.f32 %v825, 0.0
        %v948 = vmax.f32 %v828, 0.0
        %v949 = vmax.f32 %v833, 0.0
        %v950 = vmax.f32 %v836, 0.0
        %v951 = vmax.f32 %v841, 0.0
        %v952 = vmax.f32 %v844, 0.0
        %v953 = vmax.f32 %v849, 0.0
        %v954 = vmax.f32 %v852, 0.0
        %v955 = vmax.f32 %v857, 0.0
        %v956 = vmax.f32 %v860, 0.0
        %v957 = vmax.f32 %v865, 0.0
        %v958 = vmax.f32 %v868, 0.0
        %v959 = vmax.f32 %v873, 0.0
        %v960 = vmax.f32 %v876, 0.0
        %v961 = vmax.f32 %v881, 0.0
        %v962 = vmax.f32 %v884, 0.0
        %v963 = vmax.f32 %v889, 0.0
        %v964 = vmax.f32 %v892, 0.0
        %v965 = vmax.f32 %v897, 0.0
        %v966 = vmax.f32 %v900, 0.0
        %vm967 = vcmask 523264
        %v968 = vsel %vm967, %v903, 0.0
        %v969 = vsel %vm967, %v904, 0.0
        %v970 = vadd.f32 %v968, %v969
        %v971 = vsel %vm967, %v905, 0.0
        %v972 = vadd.f32 %v970, %v971
        %v973 = vsel %vm967, %v906, 0.0
        %v974 = vadd.f32 %v972, %v973
        %v975 = vsel %vm967, %v907, 0.0
        %v976 = vadd.f32 %v974, %v975
        %v977 = vsel %vm967, %v908, 0.0
        %v978 = vadd.f32 %v976, %v977
        %v979 = vsel %vm967, %v909, 0.0
        %v980 = vadd.f32 %v978, %v979
        %v981 = vsel %vm967, %v910, 0.0
        %v982 = vadd.f32 %v980, %v981
        %v983 = vrot.slane %v982, 4
        %v984 = vadd.f32 %v982, %v983
        %v985 = vrot.slane %v984, 2
        %v986 = vadd.f32 %v984, %v985
        %v987 = vrot.slane %v986, 1
        %v988 = vadd.f32 %v986, %v987
        %v989 = vsel %vm967, %v911, 0.0
        %v990 = vsel %vm967, %v912, 0.0
        %v991 = vadd.f32 %v989, %v990
        %v992 = vsel %vm967, %v913, 0.0
        %v993 = vadd.f32 %v991, %v992
        %v994 = vsel %vm967, %v914, 0.0
        %v995 = vadd.f32 %v993, %v994
        %v996 = vsel %vm967, %v915, 0.0
        %v997 = vadd.f32 %v995, %v996
        %v998 = vsel %vm967, %v916, 0.0
        %v999 = vadd.f32 %v997, %v998
        %v1000 = vsel %vm967, %v917, 0.0
        %v1001 = vadd.f32 %v999, %v1000
        %v1002 = vsel %vm967, %v918, 0.0
        %v1003 = vadd.f32 %v1001, %v1002
        %v1004 = vrot.slane %v1003, 4
        %v1005 = vadd.f32 %v1003, %v1004
        %v1006 = vrot.slane %v1005, 2
        %v1007 = vadd.f32 %v1005, %v1006
        %v1008 = vrot.slane %v1007, 1
        %v1009 = vadd.f32 %v1007, %v1008
        %v1010 = vsel %vm967, %v919, 0.0
        %v1011 = vsel %vm967, %v920, 0.0
        %v1012 = vadd.f32 %v1010, %v1011
        %v1013 = vsel %vm967, %v921, 0.0
        %v1014 = vadd.f32 %v1012, %v1013
        %v1015 = vsel %vm967, %v922, 0.0
        %v1016 = vadd.f32 %v1014, %v1015
        %v1017 = vsel %vm967, %v923, 0.0
        %v1018 = vadd.f32 %v1016, %v1017
        %v1019 = vsel %vm967, %v924, 0.0
        %v1020 = vadd.f32 %v1018, %v1019
        %v1021 = vsel %vm967, %v925, 0.0
        %v1022 = vadd.f32 %v1020, %v1021
        %v1023 = vsel %vm967, %v926, 0.0
        %v1024 = vadd.f32 %v1022, %v1023
        %v1025 = vrot.slane %v1024, 4
        %v1026 = vadd.f32 %v1024, %v1025
        %v1027 = vrot.slane %v1026, 2
        %v1028 = vadd.f32 %v1026, %v1027
        %v1029 = vrot.slane %v1028, 1
        %v1030 = vadd.f32 %v1028, %v1029
        %v1031 = vsel %vm967, %v927, 0.0
        %v1032 = vsel %vm967, %v928, 0.0
        %v1033 = vadd.f32 %v1031, %v1032
        %v1034 = vsel %vm967, %v929, 0.0
        %v1035 = vadd.f32 %v1033, %v1034
        %v1036 = vsel %vm967, %v930, 0.0
        %v1037 = vadd.f32 %v1035, %v1036
        %v1038 = vsel %vm967, %v931, 0.0
        %v1039 = vadd.f32 %v1037, %v1038
        %v1040 = vsel %vm967, %v932, 0.0
        %v1041 = vadd.f32 %v1039, %v1040
        %v1042 = vsel %vm967, %v933, 0.0
        %v1043 = vadd.f32 %v1041, %v1042
        %v1044 = vsel %vm967, %v934, 0.0
        %v1045 = vadd.f32 %v1043, %v1044
        %v1046 = vrot.slane %v1045, 4
        %v1047 = vadd.f32 %v1045, %v1046
        %v1048 = vrot.slane %v1047, 2
        %v1049 = vadd.f32 %v1047, %v1048
        %v1050 = vrot.slane %v1049, 1
        %v1051 = vadd.f32 %v1049, %v1050
        %v1052 = vsel %vm967, %v935, 0.0
        %v1053 = vsel %vm967, %v936, 0.0
        %v1054 = vadd.f32 %v1052, %v1053
        %v1055 = vsel %vm967, %v937, 0.0
        %v1056 = vadd.f32 %v1054, %v1055
        %v1057 = vsel %vm967, %v938, 0.0
        %v1058 = vadd.f32 %v1056, %v1057
        %v1059 = vsel %vm967, %v939, 0.0
        %v1060 = vadd.f32 %v1058, %v1059
        %v1061 = vsel %vm967, %v940, 0.0
        %v1062 = vadd.f32 %v1060, %v1061
        %v1063 = vsel %vm967, %v941, 0.0
        %v1064 = vadd.f32 %v1062, %v1063
        %v1065 = vsel %vm967, %v942, 0.0
        %v1066 = vadd.f32 %v1064, %v1065
        %v1067 = vrot.slane %v1066, 4
        %v1068 = vadd.f32 %v1066, %v1067
        %v1069 = vrot.slane %v1068, 2
        %v1070 = vadd.f32 %v1068, %v1069
        %v1071 = vrot.slane %v1070, 1
        %v1072 = vadd.f32 %v1070, %v1071
        %v1073 = vsel %vm967, %v943, 0.0
        %v1074 = vsel %vm967, %v944, 0.0
        %v1075 = vadd.f32 %v1073, %v1074
        %v1076 = vsel %vm967, %v945, 0.0
        %v1077 = vadd.f32 %v1075, %v1076
        %v1078 = vsel %vm967, %v946, 0.0
        %v1079 = vadd.f32 %v1077, %v1078
        %v1080 = vsel %vm967, %v947, 0.0
        %v1081 = vadd.f32 %v1079, %v1080
        %v1082 = vsel %vm967, %v948, 0.0
        %v1083 = vadd.f32 %v1081, %v1082
        %v1084 = vsel %vm967, %v949, 0.0
        %v1085 = vadd.f32 %v1083, %v1084
        %v1086 = vsel %vm967, %v950, 0.0
        %v1087 = vadd.f32 %v1085, %v1086
        %v1088 = vrot.slane %v1087, 4
        %v1089 = vadd.f32 %v1087, %v1088
        %v1090 = vrot.slane %v1089, 2
        %v1091 = vadd.f32 %v1089, %v1090
        %v1092 = vrot.slane %v1091, 1
        %v1093 = vadd.f32 %v1091, %v1092
        %v1094 = vsel %vm967, %v951, 0.0
        %v1095 = vsel %vm967, %v952, 0.0
        %v1096 = vadd.f32 %v1094, %v1095
        %v1097 = vsel %vm967, %v953, 0.0
        %v1098 = vadd.f32 %v1096, %v1097
        %v1099 = vsel %vm967, %v954, 0.0
        %v1100 = vadd.f32 %v1098, %v1099
        %v1101 = vsel %vm967, %v955, 0.0
        %v1102 = vadd.f32 %v1100, %v1101
        %v1103 = vsel %vm967, %v956, 0.0
        %v1104 = vadd.f32 %v1102, %v1103
        %v1105 = vsel %vm967, %v957, 0.0
        %v1106 = vadd.f32 %v1104, %v1105
        %v1107 = vsel %vm967, %v958, 0.0
        %v1108 = vadd.f32 %v1106, %v1107
        %v1109 = vrot.slane %v1108, 4
        %v1110 = vadd.f32 %v1108, %v1109
        %v1111 = vrot.slane %v1110, 2
        %v1112 = vadd.f32 %v1110, %v1111
        %v1113 = vrot.slane %v1112, 1
        %v1114 = vadd.f32 %v1112, %v1113
        %v1115 = vsel %vm967, %v959, 0.0
        %v1116 = vsel %vm967, %v960, 0.0
        %v1117 = vadd.f32 %v1115, %v1116
        %v1118 = vsel %vm967, %v961, 0.0
        %v1119 = vadd.f32 %v1117, %v1118
        %v1120 = vsel %vm967, %v962, 0.0
        %v1121 = vadd.f32 %v1119, %v1120
        %v1122 = vsel %vm967, %v963, 0.0
        %v1123 = vadd.f32 %v1121, %v1122
        %v1124 = vsel %vm967, %v964, 0.0
        %v1125 = vadd.f32 %v1123, %v1124
        %v1126 = vsel %vm967, %v965, 0.0
        %v1127 = vadd.f32 %v1125, %v1126
        %v1128 = vsel %vm967, %v966, 0.0
        %v1129 = vadd.f32 %v1127, %v1128
        %v1130 = vrot.slane %v1129, 4
        %v1131 = vadd.f32 %v1129, %v1130
        %v1132 = vrot.slane %v1131, 2
        %v1133 = vadd.f32 %v1131, %v1132
        %v1134 = vrot.slane %v1133, 1
        %v1135 = vadd.f32 %v1133, %v1134
        %v1136 = vmul.f32 %v988, 0.015625
        %v1137 = vmul.f32 %v1009, 0.015625
        %v1138 = vmul.f32 %v1030, 0.015625
        %v1139 = vmul.f32 %v1051, 0.015625
        %v1140 = vmul.f32 %v1072, 0.015625
        %v1141 = vmul.f32 %v1093, 0.015625
        %v1142 = vmul.f32 %v1114, 0.015625
        %v1143 = vmul.f32 %v1135, 0.015625
        %v1144 = vpack.c.bf16 %v1136, %v1136
        %v1145 = vpack.c.bf16 %v1137, %v1137
        %v1146 = vpack.c.bf16 %v1138, %v1138
        %v1147 = vpack.c.bf16 %v1139, %v1139
        %v1148 = vpack.c.bf16 %v1140, %v1140
        %v1149 = vpack.c.bf16 %v1141, %v1141
        %v1150 = vpack.c.bf16 %v1142, %v1142
        %v1151 = vpack.c.bf16 %v1143, %v1143
        %v1152 = vld [vmem:[%s259] sm:$0xf]
        %v1153 = vld [vmem:[%s259 + $0x4] sm:$0xf]
        %v1154 = vld [vmem:[%s259 + $0x8] sm:$0xf]
        %v1155 = vld [vmem:[%s259 + $0xc] sm:$0xf]
        %v1156 = vld [vmem:[%s259 + $0x10] sm:$0xf]
        %v1157 = vld [vmem:[%s259 + $0x14] sm:$0xf]
        %v1158 = vld [vmem:[%s259 + $0x18] sm:$0xf]
        %v1159 = vld [vmem:[%s259 + $0x1c] sm:$0xf]
        %v1168 = vunpack.c.l.b16 %v1144
        %v1169 = vunpack.c.l.b16 %v1145
        %v1170 = vunpack.c.l.b16 %v1146
        %v1171 = vunpack.c.l.b16 %v1147
        %v1172 = vunpack.c.l.b16 %v1148
        %v1173 = vunpack.c.l.b16 %v1149
        %v1174 = vunpack.c.l.b16 %v1150
        %v1175 = vunpack.c.l.b16 %v1151
        %vm1176 = vcmask 1041409
        %v1177 = vsel %vm1176, %v1169, %v1168
        %vm1178 = vcmask 1042434
        %v1179 = vsel %vm1178, %v1170, %v1177
        %vm1180 = vcmask 1043459
        %v1181 = vsel %vm1180, %v1171, %v1179
        %vm1182 = vcmask 1044484
        %v1183 = vsel %vm1182, %v1172, %v1181
        %vm1184 = vcmask 1045509
        %v1185 = vsel %vm1184, %v1173, %v1183
        %vm1186 = vcmask 1046534
        %v1187 = vsel %vm1186, %v1174, %v1185
        %vm1188 = vcmask 1047559
        %v1189 = vsel %vm1188, %v1175, %v1187
        %v1190 = vpack.c.b16 %v1189, %v1189
        %v1199 = vunpack.c.l.b16 %v1152
        %v1200 = vunpack.c.l.b16 %v1153
        %v1201 = vunpack.c.l.b16 %v1154
        %v1202 = vunpack.c.l.b16 %v1155
        %v1203 = vunpack.c.l.b16 %v1156
        %v1204 = vunpack.c.l.b16 %v1157
        %v1205 = vunpack.c.l.b16 %v1158
        %v1206 = vunpack.c.l.b16 %v1159
        %v1207 = vpack.c.b16 %v1200, %v1199
        %v1208 = vpack.c.b16 %v1202, %v1201
        %v1209 = vpack.c.b16 %v1204, %v1203
        %v1210 = vpack.c.b16 %v1206, %v1205
        %v1216 = vsel %vm967, %v1190, 0
        %1218 = vmatprep.subr.bf16.mxu0 0
        %1219 = vmatpush1.bf16.msra.mxu0 0
        %1220 = vmatprep.subr.bf16.mxu0 0
        %1221 = vmatpush1.bf16.msra.mxu0 0
        %1222 = vmatprep.subr.bf16.mxu0 0
        %1223 = vmatpush1.bf16.msra.mxu0 0
        %1224 = vmatprep.subr.bf16.mxu0 0
        %1225 = vmatpush1.bf16.msra.mxu0 0
        %1226 = vmatprep.subr.bf16.mxu0 0
        %1227 = vmatpush1.bf16.msra.mxu0 %v1210
        %1228 = vmatprep.subr.bf16.mxu0 0
        %1229 = vmatpush1.bf16.msra.mxu0 %v1209
        %1230 = vmatprep.subr.bf16.mxu0 0
        %1231 = vmatpush1.bf16.msra.mxu0 %v1208
        %1232 = vmatprep.subr.bf16.mxu0 0
        %1233 = vmatpush1.bf16.msra.mxu0 %v1207
        %1234 = vmatprep.subr.bf16.mxu0 0
        %1235 = vmatpush2.bf16.msra.mxu0 0
        %1236 = vmatprep.subr.bf16.mxu0 0
        %1237 = vmatpush2.bf16.msra.mxu0 0
        %1238 = vmatprep.subr.bf16.mxu0 0
        %1239 = vmatpush2.bf16.msra.mxu0 0
        %1240 = vmatprep.subr.bf16.mxu0 0
        %1241 = vmatpush2.bf16.msra.mxu0 0
        %1242 = vmatprep.subr.bf16.mxu0 0
        %1243 = vmatpush2.bf16.msra.mxu0 0
        %1244 = vmatprep.subr.bf16.mxu0 0
        %1245 = vmatpush2.bf16.msra.mxu0 0
        %1246 = vmatprep.subr.bf16.mxu0 0
        %1247 = vmatpush2.bf16.msra.mxu0 0
        %1248 = vmatprep.subr.bf16.mxu0 0
        %1249 = vmatpush2.bf16.msra.mxu0 0
        %1250 = vmatprep.mubr.bf16.mxu0 0
        %1251 = vmatmul.mubr.bf16.gmra.mxu0 %v1216
        %v1252 = vpop.f32.mrf.mxu0
        %v1253 = vadd.f32 0.0, %v1252
        %v1254 = vpop.f32.mrf.mxu0
        %v1255 = vpop.f32.mrf.mxu0
        %v1256 = vpop.f32.mrf.mxu0
        %1257 = vdwg.mxu0
        %p1258 = scmp.eq.s32.totalorder %s21, 0
        // Predicated region
        $region37: #{tpu_custom_call.1} parent=35 // pred_check
          %p1259 = pneg %p1258
        $region38: #{tpu_custom_call.1} parent=35 // pred_check_branch
          %1261 = sbr.rel (%p1259) target = $region40
        $region39: #{tpu_custom_call.1} parent=35 // pred_region
          %v1262 = vld [vmem:[%s3] sm:$0x1]
          %v1264 = vlaneseq
          %v1265 = vshrl.u32 %v1264, 7
          %v1266 = vsub.s32 0, %v1265
          %v1267 = vrot.slane %v1262, %v1266
          %v1269 = vadd.f32 %v1267, 0.0
          %1270 = vst [vmem:[#allocation2] sm:$0xff] %v1269
        $region40: #{tpu_custom_call.1} parent=35 // pred_fallthru
          _
        %v1271 = vld [vmem:[#allocation2] sm:$0xff]
        %v1272 = vadd.f32 %v1271, %v1253
        %1273 = vst [vmem:[#allocation2] sm:$0xff] %v1272
        // Predicated region
        $region41: #{tpu_custom_call.1} parent=35 // pred_check
          %p1274 = pneg %p147
        $region42: #{tpu_custom_call.1} parent=35 // pred_check_branch
          %1276 = sbr.rel (%p1274) target = $region44
        $region43: #{tpu_custom_call.1} parent=35 // pred_region
          %s1278 = ssub.s32 128, 128
          %1279 = vsyncadd [#allocation3], %s1278
          %s1280 = smul.addr %s20, 128
          %s1281 = scalar_lea.hbm %s4, %s1280
          %s1283 = sshll.u32 [#allocation2], 4
          %s1284 = int_to_ptr.vmem [resolvable:$true] %s1283
          %1286 = dma.vmem_to_hbm [thread:$0]  %s1284, 128, %s1281, [#allocation3]
        $region44: #{tpu_custom_call.1} parent=35 // pred_fallthru
          _
        // Predicated region
        $region45: #{tpu_custom_call.1} parent=35 // pred_check
          %p1287 = pneg %p147
        $region46: #{tpu_custom_call.1} parent=35 // pred_check_branch
          %1289 = sbr.rel (%p1287) target = $region48
        $region47: #{tpu_custom_call.1} parent=35 // pred_region
          %1290 = dma.done [#allocation3], 128
        $region48: #{tpu_custom_call.1} parent=35 // pred_fallthru
          _
      $region36: #{tpu_custom_call.1} parent=5 // pred_fallthru
        _
      %p1291 = scmp.le.s32.totalorder 2, %s11
      // Predicated region
      $region49: #{tpu_custom_call.1} parent=5 // pred_check
        %p1292 = pneg %p1291
      $region50: #{tpu_custom_call.1} parent=5 // pred_check_branch
        %1294 = sbr.rel (%p1292) target = $region52
      $region51: #{tpu_custom_call.1} parent=5 // pred_region
        %s1295 = ssub.s32 %s11, 2
      $region52: #{tpu_custom_call.1} parent=5 // pred_fallthru
        _
    $region6: #{tpu_custom_call.1} parent=1 // loop_footer
      %s15 = sadd.s32 1, %s11
    $region7: #{tpu_custom_call.1} parent=1 // loop_footer_branch
      %10 = sbr.rel target = $region3
    $region8: #{tpu_custom_call.1} parent=1 // loop_exit
      _
    %1296 = vsyncpa [#allocation3], 1
    %s1297 = scalar_lea.sflag [#allocation3], 1
    %1298 = vsyncpa %s1297, 1

</llo_original>
